<compile_context>
chip_gen: v7x
topology: tpu7x:2x2x1
jax: 0.10.0
libtpu: 0.0.40
codegen_flags: <defaults>
</compile_context>

<pallas_src>
import functools

import jax
import jax.numpy as jnp
from jax import lax
from jax.experimental import pallas as pl
from jax.experimental.pallas import tpu as pltpu


def _alpha_loss_kernel(yv_ref, v_ref, yp_ref, p_ref, out_ref, acc_ref, *,
                       rows_valid, tile_rows, needs_mask, inv_b):
    i = pl.program_id(0)

    @pl.when(i == 0)
    def _():
        acc_ref[0] = jnp.float32(0.0)

    # Policy term for this tile: sum(policy * log(1e-8 + y_policy)).
    # Upcast to f32 in-kernel (inputs may be bf16); negation is folded into the
    # scalar epilogue below.
    yp = yp_ref[...].astype(jnp.float32)
    p = p_ref[...].astype(jnp.float32)
    contrib = p * jnp.log(yp + jnp.float32(1e-8))            # (tile_rows, C)

    if needs_mask:
        # Tail tile: rows >= rows_valid hold unspecified data -> select 0.
        row = i * tile_rows + lax.broadcasted_iota(jnp.int32, contrib.shape, 0)
        contrib = jnp.where(row < rows_valid, contrib, jnp.float32(0.0))

    acc_ref[0] += jnp.sum(contrib)

    @pl.when(i == pl.num_programs(0) - 1)
    def _():
        # Value term: tiny resident (1, B) blocks, computed once at the end.
        dv = v_ref[...].astype(jnp.float32) - yv_ref[...].astype(jnp.float32)
        total = jnp.sum(dv * dv) - acc_ref[0]
        out_ref[0, 0] = total * jnp.float32(inv_b)


def alpha_loss(y_value, value, y_policy, policy, *, tile_bytes=4 * 1024 * 1024):
    """Pallas equivalent of AlphaLoss.forward.

    y_value, value   : (B, 1) float (any float dtype)
    y_policy, policy : (B, A) float (any float dtype)
    returns scalar float32
    """
    B = value.shape[0]
    A = y_policy.shape[1]
    N = B * A

    # ---- lane-dense flattening of the policy slab (free reshape) ----
    C = None
    for c in (1024, 512, 256, 128):
        if N % c == 0:
            C = c
            break
    if C is None:
        C = A                      # natural layout: block spans full last dim
    R = N // C

    yp = y_policy.reshape(R, C)
    p = policy.reshape(R, C)
    yv = y_value.reshape(1, B)     # tiny, resident for the whole grid
    v = value.reshape(1, B)

    # ---- tile rows: target ~tile_bytes of f32-equivalent elements per step ----
    itemsize = jnp.dtype(y_policy.dtype).itemsize
    row_align = max(8, 32 // max(1, itemsize))   # 8 for f32, 16 for bf16, 32 for int8
    target_elems = max(1, tile_bytes // 4)
    if R < row_align:
        tile_r = R                               # single tiny block (== full dim)
    else:
        tile_r = (max(row_align, target_elems // C) // row_align) * row_align
        tile_r = max(row_align, min(tile_r, (R // row_align) * row_align))

    needs_mask = (R % tile_r) != 0
    grid = (pl.cdiv(R, tile_r),)

    kern = functools.partial(
        _alpha_loss_kernel,
        rows_valid=R,
        tile_rows=tile_r,
        needs_mask=needs_mask,
        inv_b=1.0 / float(B),
    )

    out = pl.pallas_call(
        kern,
        out_shape=jax.ShapeDtypeStruct((1, 1), jnp.float32),
        grid_spec=pltpu.PrefetchScalarGridSpec(
            num_scalar_prefetch=0,
            grid=grid,
            in_specs=[
                pl.BlockSpec((1, B), lambda i: (0, 0)),        # y_value (resident)
                pl.BlockSpec((1, B), lambda i: (0, 0)),        # value   (resident)
                pl.BlockSpec((tile_r, C), lambda i: (i, 0)),   # y_policy slab
                pl.BlockSpec((tile_r, C), lambda i: (i, 0)),   # policy slab
            ],
            out_specs=pl.BlockSpec(memory_space=pltpu.SMEM),
            scratch_shapes=[pltpu.SMEM((1,), jnp.float32)],
        ),
        compiler_params=pltpu.CompilerParams(
            # grid axis carries the scalar accumulator -> reduction axis
            dimension_semantics=("arbitrary",),
            # above default scoped limits (16 MiB v5e / 32 MiB v6e,v7x) but safely
            # inside v7x's 64 MiB physical VMEM with double-buffered 4 MiB tiles.
            vmem_limit_bytes=48 * 1024 * 1024,
        ),
    )(yv, v, yp, p)
    return out[0, 0]


def _alpha_loss_ref(y_value, value, y_policy, policy):
    # pure-JAX reference mirroring the PyTorch module (f32 math)
    yv = y_value.astype(jnp.float32)
    v = value.astype(jnp.float32)
    yp = y_policy.astype(jnp.float32)
    p = policy.astype(jnp.float32)
    value_error = (v - yv) ** 2
    policy_error = jnp.sum(-p * jnp.log(1e-8 + yp), axis=1)
    return jnp.mean(value_error.reshape(-1) + policy_error)


def _make_inputs(key, B, A, dtype):
    k1, k2, k3, k4 = jax.random.split(key, 4)
    y_value = jax.random.uniform(k1, (B, 1), jnp.float32, -1.0, 1.0).astype(dtype)
    value = jax.random.uniform(k2, (B, 1), jnp.float32, -1.0, 1.0).astype(dtype)
    y_policy = jax.nn.softmax(jax.random.normal(k3, (B, A), jnp.float32), -1).astype(dtype)
    policy = jax.nn.softmax(jax.random.normal(k4, (B, A), jnp.float32), -1).astype(dtype)
    return y_value, value, y_policy, policy


if __name__ == "__main__":
    key = jax.random.PRNGKey(0)

    # (B, A, dtype, tile_bytes) -- small shapes; tile_bytes shrunk on some cases
    # to exercise multi-step grids, tail masking, the flattened lane-dense path,
    # the natural-layout fallback, and bf16 inputs.
    cases = [
        (8, 32, jnp.float32, None),            # tiny single-block path (demo size)
        (256, 80, jnp.float32, 32 * 1024),     # flattened C=1024, 3 steps + tail mask
        (40, 56, jnp.float32, 8 * 1024),       # fallback (C=A), 2 steps + tail mask
        (192, 128, jnp.bfloat16, 64 * 1024),   # bf16 streaming, flattened, 2 steps
    ]

    for idx, (B, A, dtype, tb) in enumerate(cases):
        key, sub = jax.random.split(key)
        y_value, value, y_policy, policy = _make_inputs(sub, B, A, dtype)

        if tb is None:
            loss = alpha_loss(y_value, value, y_policy, policy)
        else:
            loss = alpha_loss(y_value, value, y_policy, policy, tile_bytes=tb)
        loss = jax.block_until_ready(loss)

        ref = _alpha_loss_ref(y_value, value, y_policy, policy)
        assert jnp.allclose(loss, ref, rtol=1e-4, atol=1e-4), (idx, B, A, dtype, loss, ref)

    # NOTE: at toy sizes a standalone custom call is launch-bound; in production
    # prefer letting XLA fuse this loss unless B*A is large.
    print("KERNEL_OK")
</pallas_src>

<mosaic_0001>
module attributes {stable_mosaic.version = 11 : i64} {
  func.func @_alpha_loss_kernel(%arg0: i32, %arg1: memref<1x8xf32, #tpu.memory_space<vmem>>, %arg2: memref<1x8xf32, #tpu.memory_space<vmem>>, %arg3: memref<1x256xf32, #tpu.memory_space<vmem>>, %arg4: memref<1x256xf32, #tpu.memory_space<vmem>>, %arg5: memref<1x1xf32, #tpu.memory_space<smem>>, %arg6: memref<1xf32, #tpu.memory_space<smem>>) attributes {dimension_semantics = [#tpu.dimension_semantics<arbitrary>], iteration_bounds = array<i64: 1>, scalar_prefetch = 0 : i64, scratch_operands = 1 : i64, tpu.core_type = #tpu.core_type<tc>, window_params = [{pipeline_mode = #tpu.pipeline_mode<synchronous>, transform_indices = @transform_0, window_bounds = array<i64: 1, 8>}, {pipeline_mode = #tpu.pipeline_mode<synchronous>, transform_indices = @transform_1, window_bounds = array<i64: 1, 8>}, {transform_indices = @transform_2, window_bounds = array<i64: 1, 256>}, {transform_indices = @transform_3, window_bounds = array<i64: 1, 256>}, {transform_indices = @transform_4, window_bounds = array<i64: 1, 1>}]} {
    %c0_i32 = arith.constant 0 : i32
    %0 = arith.cmpi eq, %arg0, %c0_i32 : i32
    %1 = arith.extui %0 : i1 to i32
    %c0_i32_0 = arith.constant 0 : i32
    %2 = arith.cmpi ne, %1, %c0_i32_0 : i32
    scf.if %2 {
      %cst_9 = arith.constant 0.000000e+00 : f32
      %c0_10 = arith.constant 0 : index
      %19 = memref.load %arg6[%c0_10] : memref<1xf32, #tpu.memory_space<smem>>
      memref.store %cst_9, %arg6[%c0_10] : memref<1xf32, #tpu.memory_space<smem>>
    } else {
    }
    %c0 = arith.constant 0 : index
    %c0_1 = arith.constant 0 : index
    %3 = vector.load %arg3[%c0, %c0_1] : memref<1x256xf32, #tpu.memory_space<vmem>>, vector<1x256xf32>
    %c0_2 = arith.constant 0 : index
    %c0_3 = arith.constant 0 : index
    %4 = vector.load %arg4[%c0_2, %c0_3] : memref<1x256xf32, #tpu.memory_space<vmem>>, vector<1x256xf32>
    %cst = arith.constant 9.99999993E-9 : f32
    %5 = vector.broadcast %cst : f32 to vector<1x256xf32>
    %6 = arith.addf %3, %5 : vector<1x256xf32>
    %7 = math.log %6 : vector<1x256xf32>
    %8 = arith.mulf %4, %7 : vector<1x256xf32>
    %c0_4 = arith.constant 0 : index
    %9 = memref.load %arg6[%c0_4] : memref<1xf32, #tpu.memory_space<smem>>
    %10 = vector.shape_cast %8 : vector<1x256xf32> to vector<1x1x256xf32>
    %cst_5 = arith.constant dense<0.000000e+00> : vector<1xf32>
    %11 = vector.multi_reduction <add>, %10, %cst_5 [1, 2] : vector<1x1x256xf32> to vector<1xf32>
    %12 = vector.shape_cast %11 : vector<1xf32> to vector<1x1x1xf32>
    %13 = vector.extract %12[0, 0, 0] : f32 from vector<1x1x1xf32>
    %14 = arith.addf %9, %13 : f32
    %c0_6 = arith.constant 0 : index
    %15 = memref.load %arg6[%c0_6] : memref<1xf32, #tpu.memory_space<smem>>
    memref.store %14, %arg6[%c0_6] : memref<1xf32, #tpu.memory_space<smem>>
    %c0_i32_7 = arith.constant 0 : i32
    %16 = arith.cmpi eq, %arg0, %c0_i32_7 : i32
    %17 = arith.extui %16 : i1 to i32
    %c0_i32_8 = arith.constant 0 : i32
    %18 = arith.cmpi ne, %17, %c0_i32_8 : i32
    scf.if %18 {
      %c0_9 = arith.constant 0 : index
      %c0_10 = arith.constant 0 : index
      %19 = vector.load %arg2[%c0_9, %c0_10] : memref<1x8xf32, #tpu.memory_space<vmem>>, vector<1x8xf32>
      %c0_11 = arith.constant 0 : index
      %c0_12 = arith.constant 0 : index
      %20 = vector.load %arg1[%c0_11, %c0_12] : memref<1x8xf32, #tpu.memory_space<vmem>>, vector<1x8xf32>
      %21 = arith.subf %19, %20 : vector<1x8xf32>
      %22 = arith.mulf %21, %21 : vector<1x8xf32>
      %23 = vector.shape_cast %22 : vector<1x8xf32> to vector<1x1x8xf32>
      %cst_13 = arith.constant dense<0.000000e+00> : vector<1xf32>
      %24 = vector.multi_reduction <add>, %23, %cst_13 [1, 2] : vector<1x1x8xf32> to vector<1xf32>
      %25 = vector.shape_cast %24 : vector<1xf32> to vector<1x1x1xf32>
      %26 = vector.extract %25[0, 0, 0] : f32 from vector<1x1x1xf32>
      %c0_14 = arith.constant 0 : index
      %27 = memref.load %arg6[%c0_14] : memref<1xf32, #tpu.memory_space<smem>>
      %28 = arith.subf %26, %27 : f32
      %cst_15 = arith.constant 1.250000e-01 : f32
      %29 = arith.mulf %28, %cst_15 : f32
      %c0_16 = arith.constant 0 : index
      %c0_17 = arith.constant 0 : index
      %30 = memref.load %arg5[%c0_16, %c0_17] : memref<1x1xf32, #tpu.memory_space<smem>>
      memref.store %29, %arg5[%c0_16, %c0_17] : memref<1x1xf32, #tpu.memory_space<smem>>
    } else {
    }
    return
  }
  func.func @transform_0(%arg0: i32) -> (i32, i32) {
    %c0_i32 = arith.constant 0 : i32
    %c0_i32_0 = arith.constant 0 : i32
    %c0_i32_1 = arith.constant 0 : i32
    return %c0_i32, %c0_i32_0 : i32, i32
  }
  func.func @transform_1(%arg0: i32) -> (i32, i32) {
    %c0_i32 = arith.constant 0 : i32
    %c0_i32_0 = arith.constant 0 : i32
    %c0_i32_1 = arith.constant 0 : i32
    return %c0_i32, %c0_i32_0 : i32, i32
  }
  func.func @transform_2(%arg0: i32) -> (i32, i32) {
    %c0_i32 = arith.constant 0 : i32
    %c0_i32_0 = arith.constant 0 : i32
    return %arg0, %c0_i32 : i32, i32
  }
  func.func @transform_3(%arg0: i32) -> (i32, i32) {
    %c0_i32 = arith.constant 0 : i32
    %c0_i32_0 = arith.constant 0 : i32
    return %arg0, %c0_i32 : i32, i32
  }
  func.func @transform_4(%arg0: i32) -> (i32, i32) {
    %c0_i32 = arith.constant 0 : i32
    %c0_i32_0 = arith.constant 0 : i32
    %c0_i32_1 = arith.constant 0 : i32
    return %c0_i32, %c0_i32_0 : i32, i32
  }
}

</mosaic_0001>

<llo_original>
// kernel: tpu_custom_call.1
$region0: #{tpu_custom_call.1}
  #allocation0 [shape = 'u32[]', space=smem, size = 0x4, offset = 0x4, fixed_abs, tag = 'smem constant byte address 0x4 - core index']
  #allocation1 [shape = 'u32[144,128]{1,0:T(1,128)}', space=vmem, size = 0x12000, scoped, tag = 'internal scratch']
  #allocation2 [shape = 'f32[1]{0:T(128)}', space=smem, size = 0x200, scoped, tag = 'scratch operand']
  %s0 = inlined_call_operand.hbm [shape: f32[1,8], index: 0, kind: input, shape index: {}]
  %s1 = inlined_call_operand.vmem [shape: f32[1,8], index: 1, kind: input, shape index: {}]
  %s2 = inlined_call_operand.vmem [shape: f32[1,256], index: 2, kind: input, shape index: {}]
  %s3 = inlined_call_operand.vmem [shape: f32[1,256], index: 3, kind: input, shape index: {}]
  %s4 = inlined_call_operand.hbm [shape: f32[1,1], index: 4, kind: output, shape index: {}]
  %s5 = sld [smem:[#allocation0]]
  $region38: #{tpu_custom_call.1} parent=0
    _
  %s7 = ssub.s32 1, %s5
  %s8 = scalar_select 0, %s7, %s5
  $region1: #{tpu_custom_call.1} parent=0
    #allocation3 [shape = 'u8[512]{0}', space=vmem, size = 0x400, scoped, tag = 'input window, operand 0, single buffered']
    #allocation4 [shape = 's32[1]{0}', space=sflag, size = 0x4, scoped, tag = 'scoped memory for tpu_custom_call.1']
    #allocation5 [shape = 's32[1]{0}', space=sflag, size = 0x4, scoped, tag = 'scoped memory for tpu_custom_call.1']
    #allocation6 [shape = 'u8[512]{0}', space=smem, size = 0x200, scoped, tag = 'output window, operand 0, single buffered']
    %9 = vsyncpa [#allocation4], 0
    %10 = vsyncpa [#allocation5], 0
    // Predicated region
    $region2: #{tpu_custom_call.1} parent=1 // pred_check
      _
    $region3: #{tpu_custom_call.1} parent=1 // pred_check_branch
      %12 = sbr.rel (0) target = $region5
    $region4: #{tpu_custom_call.1} parent=1 // pred_region
      %s14 = ssub.s32 16, 16
      %15 = vsyncadd [#allocation4], %s14
      %s17 = sshll.u32 [#allocation3], 4
      %s18 = int_to_ptr.vmem [resolvable:$true] %s17
      %20 = dma.hbm_to_vmem [thread:$0]  %s0, 16, %s18, [#allocation4]
    $region5: #{tpu_custom_call.1} parent=1 // pred_fallthru
      _
    // Predicated region
    $region6: #{tpu_custom_call.1} parent=1 // pred_check
      _
    $region7: #{tpu_custom_call.1} parent=1 // pred_check_branch
      %22 = sbr.rel (0) target = $region9
    $region8: #{tpu_custom_call.1} parent=1 // pred_region
      _
    $region9: #{tpu_custom_call.1} parent=1 // pred_fallthru
      _
    // Predicated region
    $region10: #{tpu_custom_call.1} parent=1 // pred_check
      _
    $region11: #{tpu_custom_call.1} parent=1 // pred_check_branch
      %24 = sbr.rel (0) target = $region13
    $region12: #{tpu_custom_call.1} parent=1 // pred_region
      _
    $region13: #{tpu_custom_call.1} parent=1 // pred_fallthru
      _
    // Predicated region
    $region14: #{tpu_custom_call.1} parent=1 // pred_check
      _
    $region15: #{tpu_custom_call.1} parent=1 // pred_check_branch
      %26 = sbr.rel (0) target = $region17
    $region16: #{tpu_custom_call.1} parent=1 // pred_region
      _
    $region17: #{tpu_custom_call.1} parent=1 // pred_fallthru
      _
    // Predicated region
    $region18: #{tpu_custom_call.1} parent=1 // pred_check
      _
    $region19: #{tpu_custom_call.1} parent=1 // pred_check_branch
      %28 = sbr.rel (0) target = $region21
    $region20: #{tpu_custom_call.1} parent=1 // pred_region
      %29 = dma.done [#allocation4], 16
    $region21: #{tpu_custom_call.1} parent=1 // pred_fallthru
      _
    %p30 = scmp.eq.s32.totalorder 0, 0
    // Predicated region
    $region22: #{tpu_custom_call.1} parent=1 // pred_check
      %p31 = pneg %p30
    $region23: #{tpu_custom_call.1} parent=1 // pred_check_branch
      %33 = sbr.rel (%p31) target = $region25
    $region24: #{tpu_custom_call.1} parent=1 // pred_region
      %s34 = scalar_lea.smem [#allocation2], 0
      %35 = sst [smem:[%s34]] 0.0
    $region25: #{tpu_custom_call.1} parent=1 // pred_fallthru
      _
    %v36 = vld [vmem:[%s2] sm:$0x3]
    %v37 = vld [vmem:[%s3] sm:$0x3]
    %v38 = vadd.f32 %v36, 1e-08
    %v39 = vlog2.pop %v38
    %v40 = vmul.f32 %v39, 0.6931472
    %v41 = vmul.f32 %v37, %v40
    %s42 = sld [smem:[#allocation2]]
    %v44 = vlaneseq
    %v45 = vshrl.u32 %v44, 7
    %v46 = vsub.s32 0, %v45
    %v47 = vrot.slane %v41, %v46
    %v48 = vlaneseq
    %v49 = vshrl.u32 %v48, 7
    %v50 = vsub.s32 1, %v49
    %v51 = vrot.slane %v41, %v50
    %vm54 = vcmask 1040384
    %v55 = vsel %vm54, %v47, 0.0
    %v56 = vsel %vm54, %v51, 0.0
    %v57 = vadd.f32 %v55, %v56
    %58 = vadd.xlane.f32.xlu0 %v57
    %v59 = vpop.xlane.xlu0 %58
    %v60 = vrot.slane %v59, 4
    %v61 = vadd.f32 %v59, %v60
    %v62 = vrot.slane %v61, 2
    %v63 = vadd.f32 %v61, %v62
    %v64 = vrot.slane %v63, 1
    %v65 = vadd.f32 %v63, %v64
    %s66 = vtos %v65
    %s67 = sadd.f32 %s42, %s66
    %s68 = scalar_lea.smem [#allocation2], 0
    %69 = sst [smem:[%s68]] %s67
    // Predicated region
    $region26: #{tpu_custom_call.1} parent=1 // pred_check
      %p70 = pneg %p30
    $region27: #{tpu_custom_call.1} parent=1 // pred_check_branch
      %72 = sbr.rel (%p70) target = $region29
    $region28: #{tpu_custom_call.1} parent=1 // pred_region
      %v73 = vld [vmem:[%s1] sm:$0x1]
      %v74 = vld [vmem:[#allocation3] sm:$0x1]
      %v75 = vsub.f32 %v73, %v74
      %v76 = vmul.f32 %v75, %v75
      %vm77 = vcmask 57344
      %v78 = vsel %vm77, %v76, 0.0
      %79 = vadd.xlane.f32.xlu0 %v78
      %v80 = vpop.xlane.xlu0 %79
      %v81 = vrot.slane %v80, 4
      %v82 = vadd.f32 %v80, %v81
      %v83 = vrot.slane %v82, 2
      %v84 = vadd.f32 %v82, %v83
      %v85 = vrot.slane %v84, 1
      %v86 = vadd.f32 %v84, %v85
      %s87 = vtos %v86
      %s88 = sld [smem:[#allocation2]]
      %s89 = ssub.f32 %s87, %s88
      %s90 = smul.f32 %s89, 0.125
      %s91 = scalar_lea.smem [#allocation6], 0
      %92 = sst [smem:[%s91]] %s90
    $region29: #{tpu_custom_call.1} parent=1 // pred_fallthru
      _
    // Predicated region
    $region30: #{tpu_custom_call.1} parent=1 // pred_check
      _
    $region31: #{tpu_custom_call.1} parent=1 // pred_check_branch
      %94 = sbr.rel (0) target = $region33
    $region32: #{tpu_custom_call.1} parent=1 // pred_region
      %s96 = ssub.s32 16, 16
      %97 = vsyncadd [#allocation5], %s96
      %100 = dma.smem_to_hbm [#allocation6], 16, %s4, [#allocation5]
    $region33: #{tpu_custom_call.1} parent=1 // pred_fallthru
      _
    // Predicated region
    $region34: #{tpu_custom_call.1} parent=1 // pred_check
      _
    $region35: #{tpu_custom_call.1} parent=1 // pred_check_branch
      %102 = sbr.rel (0) target = $region37
    $region36: #{tpu_custom_call.1} parent=1 // pred_region
      %103 = dma.done [#allocation5], 16
    $region37: #{tpu_custom_call.1} parent=1 // pred_fallthru
      _
    %104 = sfence
    %105 = vsyncpa [#allocation4], 1
    %106 = vsyncpa [#allocation5], 1

</llo_original>
